<compile_context>
chip_gen: v7x
topology: tpu7x:2x2x1
jax: 0.10.0
libtpu: 0.0.40
codegen_flags: <defaults>
</compile_context>

<pallas_src>
import functools

import jax
import jax.numpy as jnp
from jax.experimental import pallas as pl
from jax.experimental.pallas import tpu as pltpu


def _trade_wealth_kernel(w_ref, b_ref, incr_ref, price_ref, strat_ref,
                         wealth_ref, out_ref, *, N, d, m):
    """One batch tile: N trading steps, VPU-only math, emit wealth (1, tk)."""
    price = price_ref[...]        # (m, tk)   f32, batch on lanes
    strategy = strat_ref[...]     # (m, tk)
    wealth = wealth_ref[...]      # (1, tk)

    for j in range(N):
        # Only the last layer of each d-block matters (reference overwrites
        # strategy_helper each inner i); dead layers are skipped entirely.
        layer = j * d + (d - 1)

        rows = []
        for o in range(m):
            wbase = (layer * m + o) * 2 * m
            # out[o] = tanh( sum_p W[o,p]*price[p] + sum_s W[o,m+s]*strategy[s] + b[o] )
            acc = w_ref[wbase] * price[0:1, :]
            for p in range(1, m):
                acc = acc + w_ref[wbase + p] * price[p:p + 1, :]
            for s in range(m):
                acc = acc + w_ref[wbase + m + s] * strategy[s:s + 1, :]
            acc = acc + b_ref[layer * m + o]
            rows.append(jnp.tanh(acc))                      # (1, tk), EUP tanh
        strategy_helper = rows[0] if m == 1 else jnp.concatenate(rows, axis=0)

        change = strategy_helper - strategy                 # (m, tk)
        # costs use the PRE-increment price (matches the PyTorch loop order)
        costs = -0.01 * jnp.sum(jnp.abs(change) * price, axis=0, keepdims=True)
        incr_j = incr_ref[j]                                # (m, tk)
        mult = jnp.sum(strategy_helper * incr_j, axis=0, keepdims=True)
        price = price + incr_j
        strategy = strategy_helper
        wealth = wealth + mult + costs

    costs = -0.01 * jnp.sum(jnp.abs(strategy) * price, axis=0, keepdims=True)
    out_ref[...] = wealth + costs                           # (1, tk) lane-dense store


def trade_wealth_forward(W, B, price, strategy, wealth, costs, incr,
                         *, d=1, tk=128):
    """Pallas wrapper.

    W:    (N*d, m, 2m)  PyTorch nn.Linear weights (out_features, in_features)
    B:    (N*d, m)      biases
    price/strategy: (K, m); wealth/costs: (K, 1); incr: (N, K, m)
    Returns wealth: (K, 1).
    `costs` is overwritten before first use in the reference forward, so the
    kernel does not consume it.
    """
    del costs  # overwritten before use in the original forward pass
    K, m = price.shape
    N = incr.shape[0]
    Nd = W.shape[0]
    assert Nd == N * d
    assert K % tk == 0 and tk % 128 == 0

    # Lane-dense layout: batch on lanes, feature m on sublanes.
    price_t = jnp.asarray(price, jnp.float32).T                    # (m, K)
    strat_t = jnp.asarray(strategy, jnp.float32).T                 # (m, K)
    wealth_t = jnp.asarray(wealth, jnp.float32).T                  # (1, K)
    incr_t = jnp.transpose(jnp.asarray(incr, jnp.float32), (0, 2, 1))  # (N, m, K)
    w_flat = jnp.asarray(W, jnp.float32).reshape(-1)               # (N*d*m*2m,)
    b_flat = jnp.asarray(B, jnp.float32).reshape(-1)               # (N*d*m,)

    kernel = functools.partial(_trade_wealth_kernel, N=N, d=d, m=m)

    out = pl.pallas_call(
        kernel,
        out_shape=jax.ShapeDtypeStruct((1, K), jnp.float32),
        grid_spec=pltpu.PrefetchScalarGridSpec(
            num_scalar_prefetch=0,
            grid=(K // tk,),
            in_specs=[
                pl.BlockSpec(memory_space=pltpu.MemorySpace.SMEM),   # W (flat)
                pl.BlockSpec(memory_space=pltpu.MemorySpace.SMEM),   # B (flat)
                pl.BlockSpec((N, m, tk), lambda i: (0, 0, i)),       # incr
                pl.BlockSpec((m, tk), lambda i: (0, i)),             # price
                pl.BlockSpec((m, tk), lambda i: (0, i)),             # strategy
                pl.BlockSpec((1, tk), lambda i: (0, i)),             # wealth
            ],
            out_specs=pl.BlockSpec((1, tk), lambda i: (0, i)),
        ),
        compiler_params=pltpu.CompilerParams(
            dimension_semantics=("parallel",)),
    )(w_flat, b_flat, incr_t, price_t, strat_t, wealth_t)

    return out.T                                                    # (K, 1)


def trade_wealth_reference(W, B, price, strategy, wealth, incr, *, d=1):
    """Pure-JAX reference mirroring the PyTorch forward exactly."""
    N = incr.shape[0]
    for j in range(N):
        helper1 = jnp.concatenate([price, strategy], axis=1)
        for i in range(d):
            sh = jnp.tanh(helper1 @ W[j * d + i].T + B[j * d + i])
        change = sh - strategy
        strategy = sh
        costs = -0.01 * jnp.sum(jnp.abs(change) * price, axis=1, keepdims=True)
        price = price + incr[j]
        mult = jnp.sum(sh * incr[j], axis=1, keepdims=True)
        wealth = wealth + mult + costs
    costs = -0.01 * jnp.sum(jnp.abs(strategy) * price, axis=1, keepdims=True)
    return wealth + costs


if __name__ == "__main__":
    # Small, deterministic problem consistent with the driver around the module:
    # m = d = 1, N = 10 trading steps, K = 256 samples.
    N, d, m = 10, 1, 1
    K, tk = 256, 128   # grid = 2 parallel batch tiles (keeps both v7x cores busy)

    key = jax.random.PRNGKey(0)
    k_w, k_b, k_incr = jax.random.split(key, 3)

    # nn.Linear(2m, m) with N(0,1) init for weight and bias, for each of N*d layers.
    W = jax.random.normal(k_w, (N * d, m, 2 * m), dtype=jnp.float32)   # (out, in)
    B = jax.random.normal(k_b, (N * d, m), dtype=jnp.float32)

    # Inputs mirroring the driver: price=1, strategy=0, wealth=1, costs=0,
    # incr ~ N(0.1/N, 0.2/sqrt(N)).
    price = jnp.ones((K, m), dtype=jnp.float32)
    strategy = jnp.zeros((K, m), dtype=jnp.float32)
    wealth = jnp.ones((K, 1), dtype=jnp.float32)
    costs = jnp.zeros((K, 1), dtype=jnp.float32)
    incr = (0.1 / N) + (0.2 / jnp.sqrt(jnp.float32(N))) * jax.random.normal(
        k_incr, (N, K, m), dtype=jnp.float32)

    out = jax.block_until_ready(
        trade_wealth_forward(W, B, price, strategy, wealth, costs, incr,
                             d=d, tk=tk))
    ref = jax.block_until_ready(
        trade_wealth_reference(W, B, price, strategy, wealth, incr, d=d))

    assert out.shape == (K, 1) and out.dtype == jnp.float32
    assert jnp.allclose(out, ref, atol=1e-5, rtol=1e-5), (
        f"mismatch: max abs err = {jnp.max(jnp.abs(out - ref))}")
    print("KERNEL_OK")
</pallas_src>

<mosaic_0001>
module attributes {stable_mosaic.version = 11 : i64} {
  func.func @_trade_wealth_kernel(%arg0: i32, %arg1: memref<20xf32, #tpu.memory_space<smem>>, %arg2: memref<10xf32, #tpu.memory_space<smem>>, %arg3: memref<10x1x128xf32, #tpu.memory_space<vmem>>, %arg4: memref<1x128xf32, #tpu.memory_space<vmem>>, %arg5: memref<1x128xf32, #tpu.memory_space<vmem>>, %arg6: memref<1x128xf32, #tpu.memory_space<vmem>>, %arg7: memref<1x128xf32, #tpu.memory_space<vmem>>) attributes {dimension_semantics = [#tpu.dimension_semantics<parallel>], iteration_bounds = array<i64: 2>, scalar_prefetch = 0 : i64, scratch_operands = 0 : i64, tpu.core_type = #tpu.core_type<tc>, window_params = [{transform_indices = @transform_0, window_bounds = array<i64: 20>}, {transform_indices = @transform_1, window_bounds = array<i64: 10>}, {transform_indices = @transform_2, window_bounds = array<i64: 10, 1, 128>}, {transform_indices = @transform_3, window_bounds = array<i64: 1, 128>}, {transform_indices = @transform_4, window_bounds = array<i64: 1, 128>}, {transform_indices = @transform_5, window_bounds = array<i64: 1, 128>}, {transform_indices = @transform_6, window_bounds = array<i64: 1, 128>}]} {
    %c0 = arith.constant 0 : index
    %c0_0 = arith.constant 0 : index
    %0 = vector.load %arg4[%c0, %c0_0] : memref<1x128xf32, #tpu.memory_space<vmem>>, vector<1x128xf32>
    %c0_1 = arith.constant 0 : index
    %c0_2 = arith.constant 0 : index
    %1 = vector.load %arg5[%c0_1, %c0_2] : memref<1x128xf32, #tpu.memory_space<vmem>>, vector<1x128xf32>
    %c0_3 = arith.constant 0 : index
    %c0_4 = arith.constant 0 : index
    %2 = vector.load %arg6[%c0_3, %c0_4] : memref<1x128xf32, #tpu.memory_space<vmem>>, vector<1x128xf32>
    %c0_5 = arith.constant 0 : index
    %3 = memref.load %arg1[%c0_5] : memref<20xf32, #tpu.memory_space<smem>>
    %4 = vector.broadcast %3 : f32 to vector<1x128xf32>
    %5 = arith.mulf %4, %0 : vector<1x128xf32>
    %c1 = arith.constant 1 : index
    %6 = memref.load %arg1[%c1] : memref<20xf32, #tpu.memory_space<smem>>
    %7 = vector.broadcast %6 : f32 to vector<1x128xf32>
    %8 = arith.mulf %7, %1 : vector<1x128xf32>
    %9 = arith.addf %5, %8 : vector<1x128xf32>
    %c0_6 = arith.constant 0 : index
    %10 = memref.load %arg2[%c0_6] : memref<10xf32, #tpu.memory_space<smem>>
    %11 = vector.broadcast %10 : f32 to vector<1x128xf32>
    %12 = arith.addf %9, %11 : vector<1x128xf32>
    %13 = math.tanh %12 : vector<1x128xf32>
    %14 = arith.subf %13, %1 : vector<1x128xf32>
    %15 = math.absf %14 : vector<1x128xf32>
    %16 = arith.mulf %15, %0 : vector<1x128xf32>
    %cst = arith.constant dense<0.000000e+00> : vector<128xf32>
    %17 = vector.multi_reduction <add>, %16, %cst [0] : vector<1x128xf32> to vector<128xf32>
    %18 = vector.shape_cast %17 : vector<128xf32> to vector<1x128xf32>
    %cst_7 = arith.constant -0.00999999977 : f32
    %19 = vector.broadcast %cst_7 : f32 to vector<1x128xf32>
    %20 = arith.mulf %19, %18 : vector<1x128xf32>
    %c0_8 = arith.constant 0 : index
    %c0_9 = arith.constant 0 : index
    %c0_10 = arith.constant 0 : index
    %21 = vector.load %arg3[%c0_8, %c0_9, %c0_10] : memref<10x1x128xf32, #tpu.memory_space<vmem>>, vector<1x1x128xf32>
    %22 = vector.shape_cast %21 : vector<1x1x128xf32> to vector<1x128xf32>
    %23 = arith.mulf %13, %22 : vector<1x128xf32>
    %cst_11 = arith.constant dense<0.000000e+00> : vector<128xf32>
    %24 = vector.multi_reduction <add>, %23, %cst_11 [0] : vector<1x128xf32> to vector<128xf32>
    %25 = vector.shape_cast %24 : vector<128xf32> to vector<1x128xf32>
    %26 = arith.addf %0, %22 : vector<1x128xf32>
    %27 = arith.addf %2, %25 : vector<1x128xf32>
    %28 = arith.addf %27, %20 : vector<1x128xf32>
    %c2 = arith.constant 2 : index
    %29 = memref.load %arg1[%c2] : memref<20xf32, #tpu.memory_space<smem>>
    %30 = vector.broadcast %29 : f32 to vector<1x128xf32>
    %31 = arith.mulf %30, %26 : vector<1x128xf32>
    %c3 = arith.constant 3 : index
    %32 = memref.load %arg1[%c3] : memref<20xf32, #tpu.memory_space<smem>>
    %33 = vector.broadcast %32 : f32 to vector<1x128xf32>
    %34 = arith.mulf %33, %13 : vector<1x128xf32>
    %35 = arith.addf %31, %34 : vector<1x128xf32>
    %c1_12 = arith.constant 1 : index
    %36 = memref.load %arg2[%c1_12] : memref<10xf32, #tpu.memory_space<smem>>
    %37 = vector.broadcast %36 : f32 to vector<1x128xf32>
    %38 = arith.addf %35, %37 : vector<1x128xf32>
    %39 = math.tanh %38 : vector<1x128xf32>
    %40 = arith.subf %39, %13 : vector<1x128xf32>
    %41 = math.absf %40 : vector<1x128xf32>
    %42 = arith.mulf %41, %26 : vector<1x128xf32>
    %cst_13 = arith.constant dense<0.000000e+00> : vector<128xf32>
    %43 = vector.multi_reduction <add>, %42, %cst_13 [0] : vector<1x128xf32> to vector<128xf32>
    %44 = vector.shape_cast %43 : vector<128xf32> to vector<1x128xf32>
    %cst_14 = arith.constant -0.00999999977 : f32
    %45 = vector.broadcast %cst_14 : f32 to vector<1x128xf32>
    %46 = arith.mulf %45, %44 : vector<1x128xf32>
    %c1_15 = arith.constant 1 : index
    %c0_16 = arith.constant 0 : index
    %c0_17 = arith.constant 0 : index
    %47 = vector.load %arg3[%c1_15, %c0_16, %c0_17] : memref<10x1x128xf32, #tpu.memory_space<vmem>>, vector<1x1x128xf32>
    %48 = vector.shape_cast %47 : vector<1x1x128xf32> to vector<1x128xf32>
    %49 = arith.mulf %39, %48 : vector<1x128xf32>
    %cst_18 = arith.constant dense<0.000000e+00> : vector<128xf32>
    %50 = vector.multi_reduction <add>, %49, %cst_18 [0] : vector<1x128xf32> to vector<128xf32>
    %51 = vector.shape_cast %50 : vector<128xf32> to vector<1x128xf32>
    %52 = arith.addf %26, %48 : vector<1x128xf32>
    %53 = arith.addf %28, %51 : vector<1x128xf32>
    %54 = arith.addf %53, %46 : vector<1x128xf32>
    %c4 = arith.constant 4 : index
    %55 = memref.load %arg1[%c4] : memref<20xf32, #tpu.memory_space<smem>>
    %56 = vector.broadcast %55 : f32 to vector<1x128xf32>
    %57 = arith.mulf %56, %52 : vector<1x128xf32>
    %c5 = arith.constant 5 : index
    %58 = memref.load %arg1[%c5] : memref<20xf32, #tpu.memory_space<smem>>
    %59 = vector.broadcast %58 : f32 to vector<1x128xf32>
    %60 = arith.mulf %59, %39 : vector<1x128xf32>
    %61 = arith.addf %57, %60 : vector<1x128xf32>
    %c2_19 = arith.constant 2 : index
    %62 = memref.load %arg2[%c2_19] : memref<10xf32, #tpu.memory_space<smem>>
    %63 = vector.broadcast %62 : f32 to vector<1x128xf32>
    %64 = arith.addf %61, %63 : vector<1x128xf32>
    %65 = math.tanh %64 : vector<1x128xf32>
    %66 = arith.subf %65, %39 : vector<1x128xf32>
    %67 = math.absf %66 : vector<1x128xf32>
    %68 = arith.mulf %67, %52 : vector<1x128xf32>
    %cst_20 = arith.constant dense<0.000000e+00> : vector<128xf32>
    %69 = vector.multi_reduction <add>, %68, %cst_20 [0] : vector<1x128xf32> to vector<128xf32>
    %70 = vector.shape_cast %69 : vector<128xf32> to vector<1x128xf32>
    %cst_21 = arith.constant -0.00999999977 : f32
    %71 = vector.broadcast %cst_21 : f32 to vector<1x128xf32>
    %72 = arith.mulf %71, %70 : vector<1x128xf32>
    %c2_22 = arith.constant 2 : index
    %c0_23 = arith.constant 0 : index
    %c0_24 = arith.constant 0 : index
    %73 = vector.load %arg3[%c2_22, %c0_23, %c0_24] : memref<10x1x128xf32, #tpu.memory_space<vmem>>, vector<1x1x128xf32>
    %74 = vector.shape_cast %73 : vector<1x1x128xf32> to vector<1x128xf32>
    %75 = arith.mulf %65, %74 : vector<1x128xf32>
    %cst_25 = arith.constant dense<0.000000e+00> : vector<128xf32>
    %76 = vector.multi_reduction <add>, %75, %cst_25 [0] : vector<1x128xf32> to vector<128xf32>
    %77 = vector.shape_cast %76 : vector<128xf32> to vector<1x128xf32>
    %78 = arith.addf %52, %74 : vector<1x128xf32>
    %79 = arith.addf %54, %77 : vector<1x128xf32>
    %80 = arith.addf %79, %72 : vector<1x128xf32>
    %c6 = arith.constant 6 : index
    %81 = memref.load %arg1[%c6] : memref<20xf32, #tpu.memory_space<smem>>
    %82 = vector.broadcast %81 : f32 to vector<1x128xf32>
    %83 = arith.mulf %82, %78 : vector<1x128xf32>
    %c7 = arith.constant 7 : index
    %84 = memref.load %arg1[%c7] : memref<20xf32, #tpu.memory_space<smem>>
    %85 = vector.broadcast %84 : f32 to vector<1x128xf32>
    %86 = arith.mulf %85, %65 : vector<1x128xf32>
    %87 = arith.addf %83, %86 : vector<1x128xf32>
    %c3_26 = arith.constant 3 : index
    %88 = memref.load %arg2[%c3_26] : memref<10xf32, #tpu.memory_space<smem>>
    %89 = vector.broadcast %88 : f32 to vector<1x128xf32>
    %90 = arith.addf %87, %89 : vector<1x128xf32>
    %91 = math.tanh %90 : vector<1x128xf32>
    %92 = arith.subf %91, %65 : vector<1x128xf32>
    %93 = math.absf %92 : vector<1x128xf32>
    %94 = arith.mulf %93, %78 : vector<1x128xf32>
    %cst_27 = arith.constant dense<0.000000e+00> : vector<128xf32>
    %95 = vector.multi_reduction <add>, %94, %cst_27 [0] : vector<1x128xf32> to vector<128xf32>
    %96 = vector.shape_cast %95 : vector<128xf32> to vector<1x128xf32>
    %cst_28 = arith.constant -0.00999999977 : f32
    %97 = vector.broadcast %cst_28 : f32 to vector<1x128xf32>
    %98 = arith.mulf %97, %96 : vector<1x128xf32>
    %c3_29 = arith.constant 3 : index
    %c0_30 = arith.constant 0 : index
    %c0_31 = arith.constant 0 : index
    %99 = vector.load %arg3[%c3_29, %c0_30, %c0_31] : memref<10x1x128xf32, #tpu.memory_space<vmem>>, vector<1x1x128xf32>
    %100 = vector.shape_cast %99 : vector<1x1x128xf32> to vector<1x128xf32>
    %101 = arith.mulf %91, %100 : vector<1x128xf32>
    %cst_32 = arith.constant dense<0.000000e+00> : vector<128xf32>
    %102 = vector.multi_reduction <add>, %101, %cst_32 [0] : vector<1x128xf32> to vector<128xf32>
    %103 = vector.shape_cast %102 : vector<128xf32> to vector<1x128xf32>
    %104 = arith.addf %78, %100 : vector<1x128xf32>
    %105 = arith.addf %80, %103 : vector<1x128xf32>
    %106 = arith.addf %105, %98 : vector<1x128xf32>
    %c8 = arith.constant 8 : index
    %107 = memref.load %arg1[%c8] : memref<20xf32, #tpu.memory_space<smem>>
    %108 = vector.broadcast %107 : f32 to vector<1x128xf32>
    %109 = arith.mulf %108, %104 : vector<1x128xf32>
    %c9 = arith.constant 9 : index
    %110 = memref.load %arg1[%c9] : memref<20xf32, #tpu.memory_space<smem>>
    %111 = vector.broadcast %110 : f32 to vector<1x128xf32>
    %112 = arith.mulf %111, %91 : vector<1x128xf32>
    %113 = arith.addf %109, %112 : vector<1x128xf32>
    %c4_33 = arith.constant 4 : index
    %114 = memref.load %arg2[%c4_33] : memref<10xf32, #tpu.memory_space<smem>>
    %115 = vector.broadcast %114 : f32 to vector<1x128xf32>
    %116 = arith.addf %113, %115 : vector<1x128xf32>
    %117 = math.tanh %116 : vector<1x128xf32>
    %118 = arith.subf %117, %91 : vector<1x128xf32>
    %119 = math.absf %118 : vector<1x128xf32>
    %120 = arith.mulf %119, %104 : vector<1x128xf32>
    %cst_34 = arith.constant dense<0.000000e+00> : vector<128xf32>
    %121 = vector.multi_reduction <add>, %120, %cst_34 [0] : vector<1x128xf32> to vector<128xf32>
    %122 = vector.shape_cast %121 : vector<128xf32> to vector<1x128xf32>
    %cst_35 = arith.constant -0.00999999977 : f32
    %123 = vector.broadcast %cst_35 : f32 to vector<1x128xf32>
    %124 = arith.mulf %123, %122 : vector<1x128xf32>
    %c4_36 = arith.constant 4 : index
    %c0_37 = arith.constant 0 : index
    %c0_38 = arith.constant 0 : index
    %125 = vector.load %arg3[%c4_36, %c0_37, %c0_38] : memref<10x1x128xf32, #tpu.memory_space<vmem>>, vector<1x1x128xf32>
    %126 = vector.shape_cast %125 : vector<1x1x128xf32> to vector<1x128xf32>
    %127 = arith.mulf %117, %126 : vector<1x128xf32>
    %cst_39 = arith.constant dense<0.000000e+00> : vector<128xf32>
    %128 = vector.multi_reduction <add>, %127, %cst_39 [0] : vector<1x128xf32> to vector<128xf32>
    %129 = vector.shape_cast %128 : vector<128xf32> to vector<1x128xf32>
    %130 = arith.addf %104, %126 : vector<1x128xf32>
    %131 = arith.addf %106, %129 : vector<1x128xf32>
    %132 = arith.addf %131, %124 : vector<1x128xf32>
    %c10 = arith.constant 10 : index
    %133 = memref.load %arg1[%c10] : memref<20xf32, #tpu.memory_space<smem>>
    %134 = vector.broadcast %133 : f32 to vector<1x128xf32>
    %135 = arith.mulf %134, %130 : vector<1x128xf32>
    %c11 = arith.constant 11 : index
    %136 = memref.load %arg1[%c11] : memref<20xf32, #tpu.memory_space<smem>>
    %137 = vector.broadcast %136 : f32 to vector<1x128xf32>
    %138 = arith.mulf %137, %117 : vector<1x128xf32>
    %139 = arith.addf %135, %138 : vector<1x128xf32>
    %c5_40 = arith.constant 5 : index
    %140 = memref.load %arg2[%c5_40] : memref<10xf32, #tpu.memory_space<smem>>
    %141 = vector.broadcast %140 : f32 to vector<1x128xf32>
    %142 = arith.addf %139, %141 : vector<1x128xf32>
    %143 = math.tanh %142 : vector<1x128xf32>
    %144 = arith.subf %143, %117 : vector<1x128xf32>
    %145 = math.absf %144 : vector<1x128xf32>
    %146 = arith.mulf %145, %130 : vector<1x128xf32>
    %cst_41 = arith.constant dense<0.000000e+00> : vector<128xf32>
    %147 = vector.multi_reduction <add>, %146, %cst_41 [0] : vector<1x128xf32> to vector<128xf32>
    %148 = vector.shape_cast %147 : vector<128xf32> to vector<1x128xf32>
    %cst_42 = arith.constant -0.00999999977 : f32
    %149 = vector.broadcast %cst_42 : f32 to vector<1x128xf32>
    %150 = arith.mulf %149, %148 : vector<1x128xf32>
    %c5_43 = arith.constant 5 : index
    %c0_44 = arith.constant 0 : index
    %c0_45 = arith.constant 0 : index
    %151 = vector.load %arg3[%c5_43, %c0_44, %c0_45] : memref<10x1x128xf32, #tpu.memory_space<vmem>>, vector<1x1x128xf32>
    %152 = vector.shape_cast %151 : vector<1x1x128xf32> to vector<1x128xf32>
    %153 = arith.mulf %143, %152 : vector<1x128xf32>
    %cst_46 = arith.constant dense<0.000000e+00> : vector<128xf32>
    %154 = vector.multi_reduction <add>, %153, %cst_46 [0] : vector<1x128xf32> to vector<128xf32>
    %155 = vector.shape_cast %154 : vector<128xf32> to vector<1x128xf32>
    %156 = arith.addf %130, %152 : vector<1x128xf32>
    %157 = arith.addf %132, %155 : vector<1x128xf32>
    %158 = arith.addf %157, %150 : vector<1x128xf32>
    %c12 = arith.constant 12 : index
    %159 = memref.load %arg1[%c12] : memref<20xf32, #tpu.memory_space<smem>>
    %160 = vector.broadcast %159 : f32 to vector<1x128xf32>
    %161 = arith.mulf %160, %156 : vector<1x128xf32>
    %c13 = arith.constant 13 : index
    %162 = memref.load %arg1[%c13] : memref<20xf32, #tpu.memory_space<smem>>
    %163 = vector.broadcast %162 : f32 to vector<1x128xf32>
    %164 = arith.mulf %163, %143 : vector<1x128xf32>
    %165 = arith.addf %161, %164 : vector<1x128xf32>
    %c6_47 = arith.constant 6 : index
    %166 = memref.load %arg2[%c6_47] : memref<10xf32, #tpu.memory_space<smem>>
    %167 = vector.broadcast %166 : f32 to vector<1x128xf32>
    %168 = arith.addf %165, %167 : vector<1x128xf32>
    %169 = math.tanh %168 : vector<1x128xf32>
    %170 = arith.subf %169, %143 : vector<1x128xf32>
    %171 = math.absf %170 : vector<1x128xf32>
    %172 = arith.mulf %171, %156 : vector<1x128xf32>
    %cst_48 = arith.constant dense<0.000000e+00> : vector<128xf32>
    %173 = vector.multi_reduction <add>, %172, %cst_48 [0] : vector<1x128xf32> to vector<128xf32>
    %174 = vector.shape_cast %173 : vector<128xf32> to vector<1x128xf32>
    %cst_49 = arith.constant -0.00999999977 : f32
    %175 = vector.broadcast %cst_49 : f32 to vector<1x128xf32>
    %176 = arith.mulf %175, %174 : vector<1x128xf32>
    %c6_50 = arith.constant 6 : index
    %c0_51 = arith.constant 0 : index
    %c0_52 = arith.constant 0 : index
    %177 = vector.load %arg3[%c6_50, %c0_51, %c0_52] : memref<10x1x128xf32, #tpu.memory_space<vmem>>, vector<1x1x128xf32>
    %178 = vector.shape_cast %177 : vector<1x1x128xf32> to vector<1x128xf32>
    %179 = arith.mulf %169, %178 : vector<1x128xf32>
    %cst_53 = arith.constant dense<0.000000e+00> : vector<128xf32>
    %180 = vector.multi_reduction <add>, %179, %cst_53 [0] : vector<1x128xf32> to vector<128xf32>
    %181 = vector.shape_cast %180 : vector<128xf32> to vector<1x128xf32>
    %182 = arith.addf %156, %178 : vector<1x128xf32>
    %183 = arith.addf %158, %181 : vector<1x128xf32>
    %184 = arith.addf %183, %176 : vector<1x128xf32>
    %c14 = arith.constant 14 : index
    %185 = memref.load %arg1[%c14] : memref<20xf32, #tpu.memory_space<smem>>
    %186 = vector.broadcast %185 : f32 to vector<1x128xf32>
    %187 = arith.mulf %186, %182 : vector<1x128xf32>
    %c15 = arith.constant 15 : index
    %188 = memref.load %arg1[%c15] : memref<20xf32, #tpu.memory_space<smem>>
    %189 = vector.broadcast %188 : f32 to vector<1x128xf32>
    %190 = arith.mulf %189, %169 : vector<1x128xf32>
    %191 = arith.addf %187, %190 : vector<1x128xf32>
    %c7_54 = arith.constant 7 : index
    %192 = memref.load %arg2[%c7_54] : memref<10xf32, #tpu.memory_space<smem>>
    %193 = vector.broadcast %192 : f32 to vector<1x128xf32>
    %194 = arith.addf %191, %193 : vector<1x128xf32>
    %195 = math.tanh %194 : vector<1x128xf32>
    %196 = arith.subf %195, %169 : vector<1x128xf32>
    %197 = math.absf %196 : vector<1x128xf32>
    %198 = arith.mulf %197, %182 : vector<1x128xf32>
    %cst_55 = arith.constant dense<0.000000e+00> : vector<128xf32>
    %199 = vector.multi_reduction <add>, %198, %cst_55 [0] : vector<1x128xf32> to vector<128xf32>
    %200 = vector.shape_cast %199 : vector<128xf32> to vector<1x128xf32>
    %cst_56 = arith.constant -0.00999999977 : f32
    %201 = vector.broadcast %cst_56 : f32 to vector<1x128xf32>
    %202 = arith.mulf %201, %200 : vector<1x128xf32>
    %c7_57 = arith.constant 7 : index
    %c0_58 = arith.constant 0 : index
    %c0_59 = arith.constant 0 : index
    %203 = vector.load %arg3[%c7_57, %c0_58, %c0_59] : memref<10x1x128xf32, #tpu.memory_space<vmem>>, vector<1x1x128xf32>
    %204 = vector.shape_cast %203 : vector<1x1x128xf32> to vector<1x128xf32>
    %205 = arith.mulf %195, %204 : vector<1x128xf32>
    %cst_60 = arith.constant dense<0.000000e+00> : vector<128xf32>
    %206 = vector.multi_reduction <add>, %205, %cst_60 [0] : vector<1x128xf32> to vector<128xf32>
    %207 = vector.shape_cast %206 : vector<128xf32> to vector<1x128xf32>
    %208 = arith.addf %182, %204 : vector<1x128xf32>
    %209 = arith.addf %184, %207 : vector<1x128xf32>
    %210 = arith.addf %209, %202 : vector<1x128xf32>
    %c16 = arith.constant 16 : index
    %211 = memref.load %arg1[%c16] : memref<20xf32, #tpu.memory_space<smem>>
    %212 = vector.broadcast %211 : f32 to vector<1x128xf32>
    %213 = arith.mulf %212, %208 : vector<1x128xf32>
    %c17 = arith.constant 17 : index
    %214 = memref.load %arg1[%c17] : memref<20xf32, #tpu.memory_space<smem>>
    %215 = vector.broadcast %214 : f32 to vector<1x128xf32>
    %216 = arith.mulf %215, %195 : vector<1x128xf32>
    %217 = arith.addf %213, %216 : vector<1x128xf32>
    %c8_61 = arith.constant 8 : index
    %218 = memref.load %arg2[%c8_61] : memref<10xf32, #tpu.memory_space<smem>>
    %219 = vector.broadcast %218 : f32 to vector<1x128xf32>
    %220 = arith.addf %217, %219 : vector<1x128xf32>
    %221 = math.tanh %220 : vector<1x128xf32>
    %222 = arith.subf %221, %195 : vector<1x128xf32>
    %223 = math.absf %222 : vector<1x128xf32>
    %224 = arith.mulf %223, %208 : vector<1x128xf32>
    %cst_62 = arith.constant dense<0.000000e+00> : vector<128xf32>
    %225 = vector.multi_reduction <add>, %224, %cst_62 [0] : vector<1x128xf32> to vector<128xf32>
    %226 = vector.shape_cast %225 : vector<128xf32> to vector<1x128xf32>
    %cst_63 = arith.constant -0.00999999977 : f32
    %227 = vector.broadcast %cst_63 : f32 to vector<1x128xf32>
    %228 = arith.mulf %227, %226 : vector<1x128xf32>
    %c8_64 = arith.constant 8 : index
    %c0_65 = arith.constant 0 : index
    %c0_66 = arith.constant 0 : index
    %229 = vector.load %arg3[%c8_64, %c0_65, %c0_66] : memref<10x1x128xf32, #tpu.memory_space<vmem>>, vector<1x1x128xf32>
    %230 = vector.shape_cast %229 : vector<1x1x128xf32> to vector<1x128xf32>
    %231 = arith.mulf %221, %230 : vector<1x128xf32>
    %cst_67 = arith.constant dense<0.000000e+00> : vector<128xf32>
    %232 = vector.multi_reduction <add>, %231, %cst_67 [0] : vector<1x128xf32> to vector<128xf32>
    %233 = vector.shape_cast %232 : vector<128xf32> to vector<1x128xf32>
    %234 = arith.addf %208, %230 : vector<1x128xf32>
    %235 = arith.addf %210, %233 : vector<1x128xf32>
    %236 = arith.addf %235, %228 : vector<1x128xf32>
    %c18 = arith.constant 18 : index
    %237 = memref.load %arg1[%c18] : memref<20xf32, #tpu.memory_space<smem>>
    %238 = vector.broadcast %237 : f32 to vector<1x128xf32>
    %239 = arith.mulf %238, %234 : vector<1x128xf32>
    %c19 = arith.constant 19 : index
    %240 = memref.load %arg1[%c19] : memref<20xf32, #tpu.memory_space<smem>>
    %241 = vector.broadcast %240 : f32 to vector<1x128xf32>
    %242 = arith.mulf %241, %221 : vector<1x128xf32>
    %243 = arith.addf %239, %242 : vector<1x128xf32>
    %c9_68 = arith.constant 9 : index
    %244 = memref.load %arg2[%c9_68] : memref<10xf32, #tpu.memory_space<smem>>
    %245 = vector.broadcast %244 : f32 to vector<1x128xf32>
    %246 = arith.addf %243, %245 : vector<1x128xf32>
    %247 = math.tanh %246 : vector<1x128xf32>
    %248 = arith.subf %247, %221 : vector<1x128xf32>
    %249 = math.absf %248 : vector<1x128xf32>
    %250 = arith.mulf %249, %234 : vector<1x128xf32>
    %cst_69 = arith.constant dense<0.000000e+00> : vector<128xf32>
    %251 = vector.multi_reduction <add>, %250, %cst_69 [0] : vector<1x128xf32> to vector<128xf32>
    %252 = vector.shape_cast %251 : vector<128xf32> to vector<1x128xf32>
    %cst_70 = arith.constant -0.00999999977 : f32
    %253 = vector.broadcast %cst_70 : f32 to vector<1x128xf32>
    %254 = arith.mulf %253, %252 : vector<1x128xf32>
    %c9_71 = arith.constant 9 : index
    %c0_72 = arith.constant 0 : index
    %c0_73 = arith.constant 0 : index
    %255 = vector.load %arg3[%c9_71, %c0_72, %c0_73] : memref<10x1x128xf32, #tpu.memory_space<vmem>>, vector<1x1x128xf32>
    %256 = vector.shape_cast %255 : vector<1x1x128xf32> to vector<1x128xf32>
    %257 = arith.mulf %247, %256 : vector<1x128xf32>
    %cst_74 = arith.constant dense<0.000000e+00> : vector<128xf32>
    %258 = vector.multi_reduction <add>, %257, %cst_74 [0] : vector<1x128xf32> to vector<128xf32>
    %259 = vector.shape_cast %258 : vector<128xf32> to vector<1x128xf32>
    %260 = arith.addf %234, %256 : vector<1x128xf32>
    %261 = arith.addf %236, %259 : vector<1x128xf32>
    %262 = arith.addf %261, %254 : vector<1x128xf32>
    %263 = math.absf %247 : vector<1x128xf32>
    %264 = arith.mulf %263, %260 : vector<1x128xf32>
    %cst_75 = arith.constant dense<0.000000e+00> : vector<128xf32>
    %265 = vector.multi_reduction <add>, %264, %cst_75 [0] : vector<1x128xf32> to vector<128xf32>
    %266 = vector.shape_cast %265 : vector<128xf32> to vector<1x128xf32>
    %cst_76 = arith.constant -0.00999999977 : f32
    %267 = vector.broadcast %cst_76 : f32 to vector<1x128xf32>
    %268 = arith.mulf %267, %266 : vector<1x128xf32>
    %269 = arith.addf %262, %268 : vector<1x128xf32>
    %c0_77 = arith.constant 0 : index
    %c0_78 = arith.constant 0 : index
    %270 = vector.load %arg7[%c0_77, %c0_78] : memref<1x128xf32, #tpu.memory_space<vmem>>, vector<1x128xf32>
    tpu.vector_store %arg7[%c0_77, %c0_78], %269 {strides = array<i32>} : memref<1x128xf32, #tpu.memory_space<vmem>>, vector<1x128xf32>,
    return
  }
  func.func @transform_0(%arg0: i32) -> i32 {
    %c0_i32 = arith.constant 0 : i32
    %c0_i32_0 = arith.constant 0 : i32
    return %c0_i32 : i32
  }
  func.func @transform_1(%arg0: i32) -> i32 {
    %c0_i32 = arith.constant 0 : i32
    %c0_i32_0 = arith.constant 0 : i32
    return %c0_i32 : i32
  }
  func.func @transform_2(%arg0: i32) -> (i32, i32, i32) {
    %c0_i32 = arith.constant 0 : i32
    %c0_i32_0 = arith.constant 0 : i32
    %c0_i32_1 = arith.constant 0 : i32
    return %c0_i32, %c0_i32_0, %arg0 : i32, i32, i32
  }
  func.func @transform_3(%arg0: i32) -> (i32, i32) {
    %c0_i32 = arith.constant 0 : i32
    %c0_i32_0 = arith.constant 0 : i32
    return %c0_i32, %arg0 : i32, i32
  }
  func.func @transform_4(%arg0: i32) -> (i32, i32) {
    %c0_i32 = arith.constant 0 : i32
    %c0_i32_0 = arith.constant 0 : i32
    return %c0_i32, %arg0 : i32, i32
  }
  func.func @transform_5(%arg0: i32) -> (i32, i32) {
    %c0_i32 = arith.constant 0 : i32
    %c0_i32_0 = arith.constant 0 : i32
    return %c0_i32, %arg0 : i32, i32
  }
  func.func @transform_6(%arg0: i32) -> (i32, i32) {
    %c0_i32 = arith.constant 0 : i32
    %c0_i32_0 = arith.constant 0 : i32
    return %c0_i32, %arg0 : i32, i32
  }
}

</mosaic_0001>

<llo_original>
// kernel: tpu_custom_call.1
$region0: #{tpu_custom_call.1}
  #allocation0 [shape = 'u32[]', space=smem, size = 0x4, offset = 0x4, fixed_abs, tag = 'smem constant byte address 0x4 - core index']
  #allocation1 [shape = 'u32[144,128]{1,0:T(1,128)}', space=vmem, size = 0x12000, scoped, tag = 'internal scratch']
  %s0 = inlined_call_operand.hbm [shape: f32[20], index: 0, kind: input, shape index: {}]
  %s1 = inlined_call_operand.vmem [shape: f32[10], index: 1, kind: input, shape index: {}]
  %s2 = inlined_call_operand.hbm [shape: f32[10,1,256], index: 2, kind: input, shape index: {}]
  %s3 = inlined_call_operand.vmem [shape: f32[1,256], index: 3, kind: input, shape index: {}]
  %s4 = inlined_call_operand.vmem [shape: f32[1,256], index: 4, kind: input, shape index: {}]
  %s5 = inlined_call_operand.vmem [shape: f32[1,256], index: 5, kind: input, shape index: {}]
  %s6 = inlined_call_operand.hbm [shape: f32[1,256], index: 6, kind: output, shape index: {}]
  %s7 = sld [smem:[#allocation0]]
  $region69: #{tpu_custom_call.1} parent=0
    _
  %s9 = ssub.s32 1, %s7
  %s10 = scalar_select 0, %s9, %s7
  $region1: #{tpu_custom_call.1} parent=0
    #allocation2 [shape = 'u8[512]{0}', space=smem, size = 0x200, scoped, tag = 'input window, operand 0, single buffered']
    #allocation3 [shape = 's32[2]{0}', space=sflag, size = 0x8, scoped, tag = 'scoped memory for tpu_custom_call.1']
    #allocation4 [shape = 's32[2]{0}', space=sflag, size = 0x8, scoped, tag = 'scoped memory for tpu_custom_call.1']
    #allocation5 [shape = 's32[2]{0}', space=sflag, size = 0x8, scoped, tag = 'scoped memory for tpu_custom_call.1']
    #allocation6 [shape = 's32[2]{0}', space=sflag, size = 0x8, scoped, tag = 'scoped memory for tpu_custom_call.1']
    #allocation7 [shape = 'u8[512]{0}', space=smem, size = 0x200, scoped, tag = 'input window, operand 1, single buffered']
    #allocation8 [shape = 'u8[10240]{0}', space=vmem, size = 0x2800, scoped, tag = 'input window, operand 2']
    #allocation9 [shape = 'u8[1024]{0}', space=vmem, size = 0x400, scoped, tag = 'output window, operand 0']
    %11 = vsyncpa [#allocation5], 0
    %12 = vsyncpa [#allocation6], 0
    %13 = vsyncpa [#allocation3], 0
    %s14 = scalar_lea.sflag [#allocation3], 1
    %15 = vsyncpa %s14, 0
    %16 = vsyncpa [#allocation4], 0
    %s17 = scalar_lea.sflag [#allocation4], 1
    %18 = vsyncpa %s17, 0
    loop: start=0, step=1, limit=4
    $region2: #{tpu_custom_call.1} parent=1 // loop_pre_header
      _
    $region3: #{tpu_custom_call.1} parent=1 // loop_header
      %s20 = sphi 0, %s24
      %p21 = scmp.ge.s32.totalorder %s20, 4
      %s28 = sphi 0, %s28
      %s30 = sphi 0, %s28
      %s31 = sphi 0, %s30
      %s45 = sphi 0, %s31
      %s49 = sphi 0, %s49
      %s51 = sphi 0, %s49
      %s52 = sphi 0, %s51
      %s66 = sphi 0, %s52
      %s72 = sphi 0, %s74
      %s75 = sphi 0, %s72
      %s76 = sphi 0, %s75
      %s92 = sphi 0, %s76
      %s98 = sphi 0, %s100
      %s101 = sphi 0, %s98
      %s102 = sphi 0, %s101
      %s118 = sphi 0, %s102
      %s124 = sphi 0, %s126
      %s127 = sphi 0, %s124
      %s128 = sphi 0, %s127
      %s144 = sphi 0, %s128
      %s150 = sphi 0, %s152
      %s153 = sphi 0, %s150
      %s154 = sphi 0, %s153
      %s170 = sphi 0, %s154
      %s176 = sphi 0, %s178
      %s179 = sphi 0, %s176
      %s180 = sphi 0, %s179
      %s196 = sphi 0, %s180
    $region4: #{tpu_custom_call.1} parent=1 // loop_header_branch
      %23 = sbr.rel (%p21) target = $region8
    $region5: #{tpu_custom_call.1} parent=1 // loop_body
      %s25 = ssub.s32 %s20, 1
      %s26 = ssub.s32 %s20, 2
      %s27 = sadd.s32 %s20, 1
      %s29 = sadd.s32 %s28, 1
      %p32 = scmp.eq.s32.totalorder %s20, 1
      %p33 = scmp.ne.s32.totalorder %s28, %s30
      %p34 = scmp.eq.s32.totalorder %s20, 0
      %p35 = por %p33, %p34
      %p36 = scmp.ne.s32.totalorder %s28, %s30
      %p37 = scmp.eq.s32.totalorder %s25, 1
      %p38 = por %p36, %p37
      %p39 = scmp.ne.s32.totalorder %s30, %s31
      %p40 = scmp.eq.s32.totalorder %s25, 0
      %p41 = por %p39, %p40
      %p42 = scmp.ne.s32.totalorder %s30, %s31
      %p43 = scmp.eq.s32.totalorder %s26, 1
      %p44 = por %p42, %p43
      %p46 = scmp.ne.s32.totalorder %s31, %s45
      %p47 = scmp.eq.s32.totalorder %s26, 0
      %p48 = por %p46, %p47
      %s50 = sadd.s32 %s49, 1
      %p53 = scmp.eq.s32.totalorder %s20, 1
      %p54 = scmp.ne.s32.totalorder %s49, %s51
      %p55 = scmp.eq.s32.totalorder %s20, 0
      %p56 = por %p54, %p55
      %p57 = scmp.ne.s32.totalorder %s49, %s51
      %p58 = scmp.eq.s32.totalorder %s25, 1
      %p59 = por %p57, %p58
      %p60 = scmp.ne.s32.totalorder %s51, %s52
      %p61 = scmp.eq.s32.totalorder %s25, 0
      %p62 = por %p60, %p61
      %p63 = scmp.ne.s32.totalorder %s51, %s52
      %p64 = scmp.eq.s32.totalorder %s26, 1
      %p65 = por %p63, %p64
      %p67 = scmp.ne.s32.totalorder %s52, %s66
      %p68 = scmp.eq.s32.totalorder %s26, 0
      %p69 = por %p67, %p68
      %s70 = ssub.s32 %s20, %s27
      %p71 = scmp.eq.s32.totalorder %s70, 0
      %s73 = sadd.s32 %s72, 1
      %s74 = scalar_select %p71, %s72, %s73
      %p77 = pneg %p71
      %p78 = scmp.eq.s32.totalorder %s20, 1
      %p79 = por %p77, %p78
      %p80 = scmp.ne.s32.totalorder %s72, %s75
      %p81 = scmp.eq.s32.totalorder %s20, 0
      %p82 = por %p80, %p81
      %p83 = scmp.ne.s32.totalorder %s72, %s75
      %p84 = scmp.eq.s32.totalorder %s25, 1
      %p85 = por %p83, %p84
      %p86 = scmp.ne.s32.totalorder %s75, %s76
      %p87 = scmp.eq.s32.totalorder %s25, 0
      %p88 = por %p86, %p87
      %p89 = scmp.ne.s32.totalorder %s75, %s76
      %p90 = scmp.eq.s32.totalorder %s26, 1
      %p91 = por %p89, %p90
      %p93 = scmp.ne.s32.totalorder %s76, %s92
      %p94 = scmp.eq.s32.totalorder %s26, 0
      %p95 = por %p93, %p94
      %s96 = ssub.s32 %s20, %s27
      %p97 = scmp.eq.s32.totalorder %s96, 0
      %s99 = sadd.s32 %s98, 1
      %s100 = scalar_select %p97, %s98, %s99
      %p103 = pneg %p97
      %p104 = scmp.eq.s32.totalorder %s20, 1
      %p105 = por %p103, %p104
      %p106 = scmp.ne.s32.totalorder %s98, %s101
      %p107 = scmp.eq.s32.totalorder %s20, 0
      %p108 = por %p106, %p107
      %p109 = scmp.ne.s32.totalorder %s98, %s101
      %p110 = scmp.eq.s32.totalorder %s25, 1
      %p111 = por %p109, %p110
      %p112 = scmp.ne.s32.totalorder %s101, %s102
      %p113 = scmp.eq.s32.totalorder %s25, 0
      %p114 = por %p112, %p113
      %p115 = scmp.ne.s32.totalorder %s101, %s102
      %p116 = scmp.eq.s32.totalorder %s26, 1
      %p117 = por %p115, %p116
      %p119 = scmp.ne.s32.totalorder %s102, %s118
      %p120 = scmp.eq.s32.totalorder %s26, 0
      %p121 = por %p119, %p120
      %s122 = ssub.s32 %s20, %s27
      %p123 = scmp.eq.s32.totalorder %s122, 0
      %s125 = sadd.s32 %s124, 1
      %s126 = scalar_select %p123, %s124, %s125
      %p129 = pneg %p123
      %p130 = scmp.eq.s32.totalorder %s20, 1
      %p131 = por %p129, %p130
      %p132 = scmp.ne.s32.totalorder %s124, %s127
      %p133 = scmp.eq.s32.totalorder %s20, 0
      %p134 = por %p132, %p133
      %p135 = scmp.ne.s32.totalorder %s124, %s127
      %p136 = scmp.eq.s32.totalorder %s25, 1
      %p137 = por %p135, %p136
      %p138 = scmp.ne.s32.totalorder %s127, %s128
      %p139 = scmp.eq.s32.totalorder %s25, 0
      %p140 = por %p138, %p139
      %p141 = scmp.ne.s32.totalorder %s127, %s128
      %p142 = scmp.eq.s32.totalorder %s26, 1
      %p143 = por %p141, %p142
      %p145 = scmp.ne.s32.totalorder %s128, %s144
      %p146 = scmp.eq.s32.totalorder %s26, 0
      %p147 = por %p145, %p146
      %s148 = ssub.s32 %s20, %s27
      %p149 = scmp.eq.s32.totalorder %s148, 0
      %s151 = sadd.s32 %s150, 1
      %s152 = scalar_select %p149, %s150, %s151
      %p155 = pneg %p149
      %p156 = scmp.eq.s32.totalorder %s20, 1
      %p157 = por %p155, %p156
      %p158 = scmp.ne.s32.totalorder %s150, %s153
      %p159 = scmp.eq.s32.totalorder %s20, 0
      %p160 = por %p158, %p159
      %p161 = scmp.ne.s32.totalorder %s150, %s153
      %p162 = scmp.eq.s32.totalorder %s25, 1
      %p163 = por %p161, %p162
      %p164 = scmp.ne.s32.totalorder %s153, %s154
      %p165 = scmp.eq.s32.totalorder %s25, 0
      %p166 = por %p164, %p165
      %p167 = scmp.ne.s32.totalorder %s153, %s154
      %p168 = scmp.eq.s32.totalorder %s26, 1
      %p169 = por %p167, %p168
      %p171 = scmp.ne.s32.totalorder %s154, %s170
      %p172 = scmp.eq.s32.totalorder %s26, 0
      %p173 = por %p171, %p172
      %s174 = ssub.s32 %s20, %s27
      %p175 = scmp.eq.s32.totalorder %s174, 0
      %s177 = sadd.s32 %s176, 1
      %s178 = scalar_select %p175, %s176, %s177
      %p181 = pneg %p175
      %p182 = scmp.eq.s32.totalorder %s20, 1
      %p183 = por %p181, %p182
      %p184 = scmp.ne.s32.totalorder %s176, %s179
      %p185 = scmp.eq.s32.totalorder %s20, 0
      %p186 = por %p184, %p185
      %p187 = scmp.ne.s32.totalorder %s176, %s179
      %p188 = scmp.eq.s32.totalorder %s25, 1
      %p189 = por %p187, %p188
      %p190 = scmp.ne.s32.totalorder %s179, %s180
      %p191 = scmp.eq.s32.totalorder %s25, 0
      %p192 = por %p190, %p191
      %p193 = scmp.ne.s32.totalorder %s179, %s180
      %p194 = scmp.eq.s32.totalorder %s26, 1
      %p195 = por %p193, %p194
      %p197 = scmp.ne.s32.totalorder %s180, %s196
      %p198 = scmp.eq.s32.totalorder %s26, 0
      %p199 = por %p197, %p198
      %p200 = scmp.le.s32.totalorder 1, %s20
      %p201 = scmp.lt.s32.totalorder %s20, 3
      %p202 = pnand %p200, %p201
      %p203 = pneg %p202
      // Predicated region
      $region9: #{tpu_custom_call.1} parent=5 // pred_check
        _
      $region10: #{tpu_custom_call.1} parent=5 // pred_check_branch
        %205 = sbr.rel (%p202) target = $region12
      $region11: #{tpu_custom_call.1} parent=5 // pred_region
        %s206 = ssub.s32 %s20, 1
        // Predicated region
        $region13: #{tpu_custom_call.1} parent=11 // pred_check
          %p207 = pneg %p41
        $region14: #{tpu_custom_call.1} parent=11 // pred_check_branch
          %209 = sbr.rel (%p207) target = $region16
        $region15: #{tpu_custom_call.1} parent=11 // pred_region
          %s211 = ssub.s32 16, 16
          %212 = vsyncadd [#allocation5], %s211
          %215 = dma.hbm_to_smem %s0, 16, [#allocation2], [#allocation5]
        $region16: #{tpu_custom_call.1} parent=11 // pred_fallthru
          _
        // Predicated region
        $region17: #{tpu_custom_call.1} parent=11 // pred_check
          %p216 = pneg %p62
        $region18: #{tpu_custom_call.1} parent=11 // pred_check_branch
          %218 = sbr.rel (%p216) target = $region20
        $region19: #{tpu_custom_call.1} parent=11 // pred_region
          %s220 = ssub.s32 16, 16
          %221 = vsyncadd [#allocation6], %s220
          %s223 = sshll.u32 %s1, 4
          %s224 = int_to_ptr.vmem [resolvable:$true] %s223
          %226 = dma.vmem_to_smem %s224, 16, [#allocation7], [#allocation6]
        $region20: #{tpu_custom_call.1} parent=11 // pred_fallthru
          _
      $region12: #{tpu_custom_call.1} parent=5 // pred_fallthru
        _
      %p227 = scmp.lt.s32.totalorder %s20, 2
      // Predicated region
      $region21: #{tpu_custom_call.1} parent=5 // pred_check
        %p228 = pneg %p227
      $region22: #{tpu_custom_call.1} parent=5 // pred_check_branch
        %230 = sbr.rel (%p228) target = $region24
      $region23: #{tpu_custom_call.1} parent=5 // pred_region
        // Predicated region
        $region25: #{tpu_custom_call.1} parent=23 // pred_check
          %p231 = pneg %p82
        $region26: #{tpu_custom_call.1} parent=23 // pred_check_branch
          %233 = sbr.rel (%p231) target = $region28
        $region27: #{tpu_custom_call.1} parent=23 // pred_region
          %s234 = sand.u32 %s72, 1
          %s235 = scalar_lea.sflag [#allocation3], %s234
          %s236 = sand.u32 %s72, 1
          %s237 = smul.addr %s236, 10
          %s238 = scalar_lea.vmem [#allocation8], %s237
          %s240 = ssub.s32 160, 160
          %241 = vsyncadd %s235, %s240
          %s242 = smul.addr %s20, 16
          %s243 = scalar_lea.hbm %s2, %s242
          %s244 = sshll.u32 %s238, 4
          %s245 = int_to_ptr.vmem [resolvable:$true] %s244
          %250 = dma.hbm_to_vmem [thread:$0]  %s243, 160, %s245, %s235, 32, 16, 1
        $region28: #{tpu_custom_call.1} parent=23 // pred_fallthru
          _
        // Predicated region
        $region29: #{tpu_custom_call.1} parent=23 // pred_check
          %p251 = pneg %p108
        $region30: #{tpu_custom_call.1} parent=23 // pred_check_branch
          %253 = sbr.rel (%p251) target = $region32
        $region31: #{tpu_custom_call.1} parent=23 // pred_region
          %p254 = scmp.lt.s32.totalorder %s20, 1
          %s255 = scalar_select %p254, %s20, 1
          %s256 = scalar_lea.vmem %s3, %s255
        $region32: #{tpu_custom_call.1} parent=23 // pred_fallthru
          _
        // Predicated region
        $region33: #{tpu_custom_call.1} parent=23 // pred_check
          %p257 = pneg %p134
        $region34: #{tpu_custom_call.1} parent=23 // pred_check_branch
          %259 = sbr.rel (%p257) target = $region36
        $region35: #{tpu_custom_call.1} parent=23 // pred_region
          %p260 = scmp.lt.s32.totalorder %s20, 1
          %s261 = scalar_select %p260, %s20, 1
          %s262 = scalar_lea.vmem %s4, %s261
        $region36: #{tpu_custom_call.1} parent=23 // pred_fallthru
          _
        // Predicated region
        $region37: #{tpu_custom_call.1} parent=23 // pred_check
          %p263 = pneg %p160
        $region38: #{tpu_custom_call.1} parent=23 // pred_check_branch
          %265 = sbr.rel (%p263) target = $region40
        $region39: #{tpu_custom_call.1} parent=23 // pred_region
          %p266 = scmp.lt.s32.totalorder %s20, 1
          %s267 = scalar_select %p266, %s20, 1
          %s268 = scalar_lea.vmem %s5, %s267
        $region40: #{tpu_custom_call.1} parent=23 // pred_fallthru
          _
      $region24: #{tpu_custom_call.1} parent=5 // pred_fallthru
        _
      %p269 = scmp.le.s32.totalorder 1, %s20
      %p270 = scmp.lt.s32.totalorder %s20, 3
      %p271 = pnand %p269, %p270
      %p272 = pneg %p271
      // Predicated region
      $region41: #{tpu_custom_call.1} parent=5 // pred_check
        _
      $region42: #{tpu_custom_call.1} parent=5 // pred_check_branch
        %274 = sbr.rel (%p271) target = $region44
      $region43: #{tpu_custom_call.1} parent=5 // pred_region
        %s275 = ssub.s32 %s20, 1
        // Predicated region
        $region45: #{tpu_custom_call.1} parent=43 // pred_check
          %p276 = pneg %p41
        $region46: #{tpu_custom_call.1} parent=43 // pred_check_branch
          %278 = sbr.rel (%p276) target = $region48
        $region47: #{tpu_custom_call.1} parent=43 // pred_region
          %279 = dma.done [#allocation5], 16
        $region48: #{tpu_custom_call.1} parent=43 // pred_fallthru
          _
        // Predicated region
        $region49: #{tpu_custom_call.1} parent=43 // pred_check
          %p280 = pneg %p62
        $region50: #{tpu_custom_call.1} parent=43 // pred_check_branch
          %282 = sbr.rel (%p280) target = $region52
        $region51: #{tpu_custom_call.1} parent=43 // pred_region
          %283 = dma.done [#allocation6], 16
        $region52: #{tpu_custom_call.1} parent=43 // pred_fallthru
          _
        %s284 = sand.u32 %s75, 1
        %s285 = scalar_lea.sflag [#allocation3], %s284
        %s286 = sand.u32 %s75, 1
        %s287 = smul.addr %s286, 10
        %s288 = scalar_lea.vmem [#allocation8], %s287
        // Predicated region
        $region53: #{tpu_custom_call.1} parent=43 // pred_check
          %p289 = pneg %p88
        $region54: #{tpu_custom_call.1} parent=43 // pred_check_branch
          %291 = sbr.rel (%p289) target = $region56
        $region55: #{tpu_custom_call.1} parent=43 // pred_region
          %292 = dma.done %s285, 160
        $region56: #{tpu_custom_call.1} parent=43 // pred_fallthru
          _
        %293 = sfence
        %p294 = pneg %p41
        %p295 = pneg %p38
        %p296 = pneg %p62
        %p297 = pneg %p59
        %s298 = sand.u32 %s75, 1
        %s299 = scalar_lea.sflag [#allocation3], %s298
        %s300 = sand.u32 %s75, 1
        %s301 = smul.addr %s300, 10
        %s302 = scalar_lea.vmem [#allocation8], %s301
        %p303 = pneg %p88
        %p304 = pneg %p85
        %p305 = scmp.lt.s32.totalorder %s25, 1
        %s306 = scalar_select %p305, %s25, 1
        %s307 = scalar_lea.vmem %s3, %s306
        %p308 = pneg %p114
        %p309 = pneg %p111
        %p310 = scmp.lt.s32.totalorder %s25, 1
        %s311 = scalar_select %p310, %s25, 1
        %s312 = scalar_lea.vmem %s4, %s311
        %p313 = pneg %p140
        %p314 = pneg %p137
        %p315 = scmp.lt.s32.totalorder %s25, 1
        %s316 = scalar_select %p315, %s25, 1
        %s317 = scalar_lea.vmem %s5, %s316
        %p318 = pneg %p166
        %p319 = pneg %p163
        %p320 = pneg %p192
        %p321 = pneg %p189
        %s322 = sand.u32 %s179, 1
        %s323 = scalar_lea.sflag [#allocation4], %s322
        %s324 = sand.u32 %s179, 1
        %s325 = scalar_lea.vmem [#allocation9], %s324
        %p326 = scmp.lt.s32.totalorder %s25, 1
        %s327 = scalar_select %p326, %s25, 1
        %s328 = scalar_lea.vmem %s3, %s327
        %p329 = scmp.lt.s32.totalorder %s25, 1
        %s330 = scalar_select %p329, %s25, 1
        %s331 = scalar_lea.vmem %s4, %s330
        %p332 = scmp.lt.s32.totalorder %s25, 1
        %s333 = scalar_select %p332, %s25, 1
        %s334 = scalar_lea.vmem %s5, %s333
        %v335 = vld [vmem:[%s328] sm:$0x1]
        %v336 = vld [vmem:[%s331] sm:$0x1]
        %v337 = vld [vmem:[%s334] sm:$0x1]
        %s338 = sld [smem:[#allocation2]]
        %v339 = vstv %s338
        %v340 = vmul.f32 %v339, %v335
        %s341 = sld [smem:[#allocation2 + $0x1]]
        %v342 = vstv %s341
        %v343 = vmul.f32 %v342, %v336
        %v344 = vadd.f32 %v340, %v343
        %s345 = sld [smem:[#allocation7]]
        %v346 = vstv %s345
        %v347 = vadd.f32 %v344, %v346
        %v348 = vtanh.pop %v347
        %v349 = vsub.f32 %v348, %v336
        %v350 = vand.u32 2147483647, %v349
        %v351 = vmul.f32 %v350, %v335
        %v352 = vadd.f32 %v351, 0.0
        %v353 = vmul.f32 %v352, -0.01
        %v354 = vld [vmem:[%s288] sm:$0x1]
        %v355 = vmul.f32 %v348, %v354
        %v356 = vadd.f32 %v355, 0.0
        %v357 = vadd.f32 %v335, %v354
        %v358 = vadd.f32 %v337, %v356
        %v359 = vadd.f32 %v358, %v353
        %s360 = sld [smem:[#allocation2 + $0x2]]
        %v361 = vstv %s360
        %v362 = vmul.f32 %v361, %v357
        %s363 = sld [smem:[#allocation2 + $0x3]]
        %v364 = vstv %s363
        %v365 = vmul.f32 %v364, %v348
        %v366 = vadd.f32 %v362, %v365
        %s367 = sld [smem:[#allocation7 + $0x1]]
        %v368 = vstv %s367
        %v369 = vadd.f32 %v366, %v368
        %v370 = vtanh.pop %v369
        %v371 = vsub.f32 %v370, %v348
        %v372 = vand.u32 2147483647, %v371
        %v373 = vmul.f32 %v372, %v357
        %v374 = vadd.f32 %v373, 0.0
        %v375 = vmul.f32 %v374, -0.01
        %s376 = scalar_lea.vmem %s288, 1 [#allocation8]
        %v377 = vld [vmem:[%s376] sm:$0x1]
        %v378 = vmul.f32 %v370, %v377
        %v379 = vadd.f32 %v378, 0.0
        %v380 = vadd.f32 %v357, %v377
        %v381 = vadd.f32 %v359, %v379
        %v382 = vadd.f32 %v381, %v375
        %s383 = sld [smem:[#allocation2 + $0x4]]
        %v384 = vstv %s383
        %v385 = vmul.f32 %v384, %v380
        %s386 = sld [smem:[#allocation2 + $0x5]]
        %v387 = vstv %s386
        %v388 = vmul.f32 %v387, %v370
        %v389 = vadd.f32 %v385, %v388
        %s390 = sld [smem:[#allocation7 + $0x2]]
        %v391 = vstv %s390
        %v392 = vadd.f32 %v389, %v391
        %v393 = vtanh.pop %v392
        %v394 = vsub.f32 %v393, %v370
        %v395 = vand.u32 2147483647, %v394
        %v396 = vmul.f32 %v395, %v380
        %v397 = vadd.f32 %v396, 0.0
        %v398 = vmul.f32 %v397, -0.01
        %s399 = scalar_lea.vmem %s288, 2 [#allocation8]
        %v400 = vld [vmem:[%s399] sm:$0x1]
        %v401 = vmul.f32 %v393, %v400
        %v402 = vadd.f32 %v401, 0.0
        %v403 = vadd.f32 %v380, %v400
        %v404 = vadd.f32 %v382, %v402
        %v405 = vadd.f32 %v404, %v398
        %s406 = sld [smem:[#allocation2 + $0x6]]
        %v407 = vstv %s406
        %v408 = vmul.f32 %v407, %v403
        %s409 = sld [smem:[#allocation2 + $0x7]]
        %v410 = vstv %s409
        %v411 = vmul.f32 %v410, %v393
        %v412 = vadd.f32 %v408, %v411
        %s413 = sld [smem:[#allocation7 + $0x3]]
        %v414 = vstv %s413
        %v415 = vadd.f32 %v412, %v414
        %v416 = vtanh.pop %v415
        %v417 = vsub.f32 %v416, %v393
        %v418 = vand.u32 2147483647, %v417
        %v419 = vmul.f32 %v418, %v403
        %v420 = vadd.f32 %v419, 0.0
        %v421 = vmul.f32 %v420, -0.01
        %s422 = scalar_lea.vmem %s288, 3 [#allocation8]
        %v423 = vld [vmem:[%s422] sm:$0x1]
        %v424 = vmul.f32 %v416, %v423
        %v425 = vadd.f32 %v424, 0.0
        %v426 = vadd.f32 %v403, %v423
        %v427 = vadd.f32 %v405, %v425
        %v428 = vadd.f32 %v427, %v421
        %s429 = sld [smem:[#allocation2 + $0x8]]
        %v430 = vstv %s429
        %v431 = vmul.f32 %v430, %v426
        %s432 = sld [smem:[#allocation2 + $0x9]]
        %v433 = vstv %s432
        %v434 = vmul.f32 %v433, %v416
        %v435 = vadd.f32 %v431, %v434
        %s436 = sld [smem:[#allocation7 + $0x4]]
        %v437 = vstv %s436
        %v438 = vadd.f32 %v435, %v437
        %v439 = vtanh.pop %v438
        %v440 = vsub.f32 %v439, %v416
        %v441 = vand.u32 2147483647, %v440
        %v442 = vmul.f32 %v441, %v426
        %v443 = vadd.f32 %v442, 0.0
        %v444 = vmul.f32 %v443, -0.01
        %s445 = scalar_lea.vmem %s288, 4 [#allocation8]
        %v446 = vld [vmem:[%s445] sm:$0x1]
        %v447 = vmul.f32 %v439, %v446
        %v448 = vadd.f32 %v447, 0.0
        %v449 = vadd.f32 %v426, %v446
        %v450 = vadd.f32 %v428, %v448
        %v451 = vadd.f32 %v450, %v444
        %s452 = sld [smem:[#allocation2 + $0xa]]
        %v453 = vstv %s452
        %v454 = vmul.f32 %v453, %v449
        %s455 = sld [smem:[#allocation2 + $0xb]]
        %v456 = vstv %s455
        %v457 = vmul.f32 %v456, %v439
        %v458 = vadd.f32 %v454, %v457
        %s459 = sld [smem:[#allocation7 + $0x5]]
        %v460 = vstv %s459
        %v461 = vadd.f32 %v458, %v460
        %v462 = vtanh.pop %v461
        %v463 = vsub.f32 %v462, %v439
        %v464 = vand.u32 2147483647, %v463
        %v465 = vmul.f32 %v464, %v449
        %v466 = vadd.f32 %v465, 0.0
        %v467 = vmul.f32 %v466, -0.01
        %s468 = scalar_lea.vmem %s288, 5 [#allocation8]
        %v469 = vld [vmem:[%s468] sm:$0x1]
        %v470 = vmul.f32 %v462, %v469
        %v471 = vadd.f32 %v470, 0.0
        %v472 = vadd.f32 %v449, %v469
        %v473 = vadd.f32 %v451, %v471
        %v474 = vadd.f32 %v473, %v467
        %s475 = sld [smem:[#allocation2 + $0xc]]
        %v476 = vstv %s475
        %v477 = vmul.f32 %v476, %v472
        %s478 = sld [smem:[#allocation2 + $0xd]]
        %v479 = vstv %s478
        %v480 = vmul.f32 %v479, %v462
        %v481 = vadd.f32 %v477, %v480
        %s482 = sld [smem:[#allocation7 + $0x6]]
        %v483 = vstv %s482
        %v484 = vadd.f32 %v481, %v483
        %v485 = vtanh.pop %v484
        %v486 = vsub.f32 %v485, %v462
        %v487 = vand.u32 2147483647, %v486
        %v488 = vmul.f32 %v487, %v472
        %v489 = vadd.f32 %v488, 0.0
        %v490 = vmul.f32 %v489, -0.01
        %s491 = scalar_lea.vmem %s288, 6 [#allocation8]
        %v492 = vld [vmem:[%s491] sm:$0x1]
        %v493 = vmul.f32 %v485, %v492
        %v494 = vadd.f32 %v493, 0.0
        %v495 = vadd.f32 %v472, %v492
        %v496 = vadd.f32 %v474, %v494
        %v497 = vadd.f32 %v496, %v490
        %s498 = sld [smem:[#allocation2 + $0xe]]
        %v499 = vstv %s498
        %v500 = vmul.f32 %v499, %v495
        %s501 = sld [smem:[#allocation2 + $0xf]]
        %v502 = vstv %s501
        %v503 = vmul.f32 %v502, %v485
        %v504 = vadd.f32 %v500, %v503
        %s505 = sld [smem:[#allocation7 + $0x7]]
        %v506 = vstv %s505
        %v507 = vadd.f32 %v504, %v506
        %v508 = vtanh.pop %v507
        %v509 = vsub.f32 %v508, %v485
        %v510 = vand.u32 2147483647, %v509
        %v511 = vmul.f32 %v510, %v495
        %v512 = vadd.f32 %v511, 0.0
        %v513 = vmul.f32 %v512, -0.01
        %s514 = scalar_lea.vmem %s288, 7 [#allocation8]
        %v515 = vld [vmem:[%s514] sm:$0x1]
        %v516 = vmul.f32 %v508, %v515
        %v517 = vadd.f32 %v516, 0.0
        %v518 = vadd.f32 %v495, %v515
        %v519 = vadd.f32 %v497, %v517
        %v520 = vadd.f32 %v519, %v513
        %s521 = sld [smem:[#allocation2 + $0x10]]
        %v522 = vstv %s521
        %v523 = vmul.f32 %v522, %v518
        %s524 = sld [smem:[#allocation2 + $0x11]]
        %v525 = vstv %s524
        %v526 = vmul.f32 %v525, %v508
        %v527 = vadd.f32 %v523, %v526
        %s528 = sld [smem:[#allocation7 + $0x8]]
        %v529 = vstv %s528
        %v530 = vadd.f32 %v527, %v529
        %v531 = vtanh.pop %v530
        %v532 = vsub.f32 %v531, %v508
        %v533 = vand.u32 2147483647, %v532
        %v534 = vmul.f32 %v533, %v518
        %v535 = vadd.f32 %v534, 0.0
        %v536 = vmul.f32 %v535, -0.01
        %s537 = scalar_lea.vmem %s288, 8 [#allocation8]
        %v538 = vld [vmem:[%s537] sm:$0x1]
        %v539 = vmul.f32 %v531, %v538
        %v540 = vadd.f32 %v539, 0.0
        %v541 = vadd.f32 %v518, %v538
        %v542 = vadd.f32 %v520, %v540
        %v543 = vadd.f32 %v542, %v536
        %s544 = sld [smem:[#allocation2 + $0x12]]
        %v545 = vstv %s544
        %v546 = vmul.f32 %v545, %v541
        %s547 = sld [smem:[#allocation2 + $0x13]]
        %v548 = vstv %s547
        %v549 = vmul.f32 %v548, %v531
        %v550 = vadd.f32 %v546, %v549
        %s551 = sld [smem:[#allocation7 + $0x9]]
        %v552 = vstv %s551
        %v553 = vadd.f32 %v550, %v552
        %v554 = vtanh.pop %v553
        %v555 = vsub.f32 %v554, %v531
        %v556 = vand.u32 2147483647, %v555
        %v557 = vmul.f32 %v556, %v541
        %v558 = vadd.f32 %v557, 0.0
        %v559 = vmul.f32 %v558, -0.01
        %s560 = scalar_lea.vmem %s288, 9 [#allocation8]
        %v561 = vld [vmem:[%s560] sm:$0x1]
        %v562 = vmul.f32 %v554, %v561
        %v563 = vadd.f32 %v562, 0.0
        %v564 = vadd.f32 %v541, %v561
        %v565 = vadd.f32 %v543, %v563
        %v566 = vadd.f32 %v565, %v559
        %v567 = vand.u32 2147483647, %v554
        %v568 = vmul.f32 %v567, %v564
        %v569 = vadd.f32 %v568, 0.0
        %v570 = vmul.f32 %v569, -0.01
        %v571 = vadd.f32 %v566, %v570
        %572 = vst [vmem:[%s325] sm:$0x1] %v571
        %s573 = sand.u32 %s179, 1
        %s574 = scalar_lea.sflag [#allocation4], %s573
        %s575 = sand.u32 %s179, 1
        %s576 = scalar_lea.vmem [#allocation9], %s575
        // Predicated region
        $region57: #{tpu_custom_call.1} parent=43 // pred_check
          %p577 = pneg %p189
        $region58: #{tpu_custom_call.1} parent=43 // pred_check_branch
          %579 = sbr.rel (%p577) target = $region60
        $region59: #{tpu_custom_call.1} parent=43 // pred_region
          %s581 = ssub.s32 16, 16
          %582 = vsyncadd %s574, %s581
          %s583 = smul.addr %s25, 16
          %s584 = scalar_lea.hbm %s6, %s583
          %s586 = sshll.u32 %s576, 4
          %s587 = int_to_ptr.vmem [resolvable:$true] %s586
          %589 = dma.vmem_to_hbm [thread:$0]  %s587, 16, %s584, %s574
        $region60: #{tpu_custom_call.1} parent=43 // pred_fallthru
          _
      $region44: #{tpu_custom_call.1} parent=5 // pred_fallthru
        _
      %p590 = scmp.le.s32.totalorder 2, %s20
      // Predicated region
      $region61: #{tpu_custom_call.1} parent=5 // pred_check
        %p591 = pneg %p590
      $region62: #{tpu_custom_call.1} parent=5 // pred_check_branch
        %593 = sbr.rel (%p591) target = $region64
      $region63: #{tpu_custom_call.1} parent=5 // pred_region
        %s594 = ssub.s32 %s20, 2
        // Predicated region
        $region65: #{tpu_custom_call.1} parent=63 // pred_check
          %p595 = pneg %p195
        $region66: #{tpu_custom_call.1} parent=63 // pred_check_branch
          %597 = sbr.rel (%p595) target = $region68
        $region67: #{tpu_custom_call.1} parent=63 // pred_region
          %s598 = sand.u32 %s180, 1
          %s599 = scalar_lea.sflag [#allocation4], %s598
          %s600 = sand.u32 %s180, 1
          %s601 = scalar_lea.vmem [#allocation9], %s600
          %602 = dma.done %s599, 16
        $region68: #{tpu_custom_call.1} parent=63 // pred_fallthru
          _
      $region64: #{tpu_custom_call.1} parent=5 // pred_fallthru
        _
    $region6: #{tpu_custom_call.1} parent=1 // loop_footer
      %s24 = sadd.s32 1, %s20
    $region7: #{tpu_custom_call.1} parent=1 // loop_footer_branch
      %19 = sbr.rel target = $region3
    $region8: #{tpu_custom_call.1} parent=1 // loop_exit
      _
    %603 = vsyncpa [#allocation3], 1
    %s604 = scalar_lea.sflag [#allocation3], 1
    %605 = vsyncpa %s604, 1
    %606 = vsyncpa [#allocation4], 1
    %s607 = scalar_lea.sflag [#allocation4], 1
    %608 = vsyncpa %s607, 1
    %609 = vsyncpa [#allocation5], 1
    %s610 = scalar_lea.sflag [#allocation5], 1
    %611 = vsyncpa %s610, 1
    %612 = vsyncpa [#allocation6], 1
    %s613 = scalar_lea.sflag [#allocation6], 1
    %614 = vsyncpa %s613, 1

</llo_original>
